<compile_context>
chip_gen: v7x
topology: tpu7x:2x2x1
jax: 0.10.0
libtpu: 0.0.40
codegen_flags: <defaults>
</compile_context>

<pallas_src>
import jax
import jax.numpy as jnp
from jax import lax
from jax.experimental import pallas as pl
from jax.experimental.pallas import tpu as pltpu


def _make_tanh_fp_kernel(tol: float, max_iter: int):
    # Plain Python scalars only -> lowered as literals, never captured consts.
    tol_sq = float(tol) * float(tol)
    max_iter = int(max_iter)

    def kernel(x_ref, wt_ref, o_ref):
        x = x_ref[...]

        # --- Peeled first iteration: z0 = 0  =>  z1 = tanh(0 @ W^T + x) ---
        z1 = jnp.tanh(x)
        err_sq = jnp.sum(z1 * z1)  # ||z0 - z1||_F^2

        def cond(carry):
            it, e2, _ = carry
            # Faithful to PyTorch's `if err < tol: break`:
            # keep looping while NOT (err < tol) -> a NaN error keeps iterating.
            return jnp.logical_and(it < max_iter, jnp.logical_not(e2 < tol_sq))

        def body(carry):
            it, _, z = carry
            # nn.Linear without bias: z @ W.T  (wt_ref already holds W^T).
            # Read the weight from its VMEM ref each iteration so Mosaic can
            # stream it instead of pinning F x F f32 in vregs across the loop.
            z_next = jnp.tanh(
                jnp.dot(z, wt_ref[...], preferred_element_type=jnp.float32) + x
            )
            d = z - z_next
            return it + 1, jnp.sum(d * d), z_next

        _, _, z_final = lax.while_loop(cond, body, (1, err_sq, z1))
        o_ref[...] = z_final.astype(o_ref.dtype)

    return kernel


def tanh_fixed_point_forward(x, weight, tol=1e-4, max_iter=50):
    """x: [B, F] float; weight: [F, F] nn.Linear weight (applied as x @ W.T)."""
    B, F = x.shape
    if max_iter <= 0:
        # PyTorch loop body never runs -> returns zeros.
        return jnp.zeros_like(x)

    # Lane-dense padding: F -> multiple of 128 (lane axis), B -> multiple of 8
    # (sublane axis).  Zero padding is exact: padded lanes/rows of z stay 0 and
    # contribute 0 to the Frobenius norm, so the iteration trace is unchanged.
    B_pad = ((B + 7) // 8) * 8
    F_pad = ((F + 127) // 128) * 128

    x32 = x.astype(jnp.float32)
    wt = weight.astype(jnp.float32).T  # pre-transpose so kernel does z @ W^T
    x_p = jnp.pad(x32, ((0, B_pad - B), (0, F_pad - F)))
    wt_p = jnp.pad(wt, ((0, F_pad - F), (0, F_pad - F)))

    kernel = _make_tanh_fp_kernel(tol, max_iter)

    out_p = pl.pallas_call(
        kernel,
        out_shape=jax.ShapeDtypeStruct((B_pad, F_pad), jnp.float32),
        in_specs=[
            pl.BlockSpec(memory_space=pltpu.MemorySpace.VMEM),
            pl.BlockSpec(memory_space=pltpu.MemorySpace.VMEM),
        ],
        out_specs=pl.BlockSpec(memory_space=pltpu.MemorySpace.VMEM),
    )(x_p, wt_p)

    return out_p[:B, :F].astype(x.dtype)


def tanh_fixed_point_reference(x, weight, tol=1e-4, max_iter=50):
    """Pure-JAX reference mirroring the PyTorch loop (for validation)."""
    z = jnp.zeros_like(x)
    it = 0
    while it < max_iter:
        z_next = jnp.tanh(z @ weight.T + x)
        err = jnp.sqrt(jnp.sum((z - z_next) ** 2))
        z = z_next
        it += 1
        if float(err) < tol:
            break
    return z


if __name__ == "__main__":
    key = jax.random.PRNGKey(0)
    k_x, k_w = jax.random.split(key)

    batch, out_features = 8, 32  # small shapes; hidden=32

    # Deterministic synthetic init mimicking nn.Linear (uniform +-1/sqrt(F)),
    # scaled by 0.5 so the fixed-point iteration contracts and converges.
    bound = 1.0 / float(out_features) ** 0.5
    weight = 0.5 * jax.random.uniform(
        k_w, (out_features, out_features), jnp.float32, minval=-bound, maxval=bound
    )
    x = jax.random.normal(k_x, (batch, out_features), jnp.float32)

    out = tanh_fixed_point_forward(x, weight, tol=1e-4, max_iter=50)
    out = jax.block_until_ready(out)

    ref = tanh_fixed_point_reference(x, weight, tol=1e-4, max_iter=50)
    assert jnp.allclose(out, ref, atol=1e-5, rtol=1e-5), (
        f"max abs diff = {jnp.max(jnp.abs(out - ref))}"
    )

    print("KERNEL_OK")
</pallas_src>

<mosaic_0001>
module attributes {stable_mosaic.version = 11 : i64} {
  func.func @kernel(%arg0: memref<8x128xf32, #tpu.memory_space<vmem>>, %arg1: memref<128x128xf32, #tpu.memory_space<vmem>>, %arg2: memref<8x128xf32, #tpu.memory_space<vmem>>) attributes {dimension_semantics = [], scalar_prefetch = 0 : i64, scratch_operands = 0 : i64, tpu.core_type = #tpu.core_type<tc>} {
    %c0 = arith.constant 0 : index
    %c0_0 = arith.constant 0 : index
    %0 = vector.load %arg0[%c0, %c0_0] : memref<8x128xf32, #tpu.memory_space<vmem>>, vector<8x128xf32>
    %1 = math.tanh %0 : vector<8x128xf32>
    %2 = arith.mulf %1, %1 : vector<8x128xf32>
    %3 = vector.shape_cast %2 : vector<8x128xf32> to vector<1x8x128xf32>
    %cst = arith.constant dense<0.000000e+00> : vector<1xf32>
    %4 = vector.multi_reduction <add>, %3, %cst [1, 2] : vector<1x8x128xf32> to vector<1xf32>
    %5 = vector.shape_cast %4 : vector<1xf32> to vector<1x1x1xf32>
    %6 = vector.extract %5[0, 0, 0] : f32 from vector<1x1x1xf32>
    %c1_i32 = arith.constant 1 : i32
    %7:3 = scf.while (%arg3 = %c1_i32, %arg4 = %6, %arg5 = %1) : (i32, f32, vector<8x128xf32>) -> (i32, f32, vector<8x128xf32>) {
      %c50_i32 = arith.constant 50 : i32
      %9 = arith.cmpi slt, %arg3, %c50_i32 : i32
      %cst_3 = arith.constant 9.99999993E-9 : f32
      %10 = arith.cmpf olt, %arg4, %cst_3 : f32
      %true = arith.constant true
      %11 = arith.xori %10, %true : i1
      %12 = arith.andi %9, %11 : i1
      scf.condition(%12) %arg3, %arg4, %arg5 : i32, f32, vector<8x128xf32>
    } do {
    ^bb0(%arg3: i32, %arg4: f32, %arg5: vector<8x128xf32>):
      %c0_3 = arith.constant 0 : index
      %c0_4 = arith.constant 0 : index
      %9 = vector.load %arg1[%c0_3, %c0_4] : memref<128x128xf32, #tpu.memory_space<vmem>>, vector<128x128xf32>
      %cst_5 = arith.constant dense<0.000000e+00> : vector<8x128xf32>
      %10 = tpu.matmul %arg5, %9, %cst_5 {dimension_numbers = #tpu.dot_dimension_numbers<[1], [0], [0], [1], [0, 0, 1, 1], [], []>} : vector<8x128xf32>, vector<128x128xf32>, vector<8x128xf32> -> vector<8x128xf32>
      %11 = arith.addf %10, %0 : vector<8x128xf32>
      %12 = math.tanh %11 : vector<8x128xf32>
      %13 = arith.subf %arg5, %12 : vector<8x128xf32>
      %c1_i32_6 = arith.constant 1 : i32
      %14 = arith.addi %arg3, %c1_i32_6 : i32
      %15 = arith.mulf %13, %13 : vector<8x128xf32>
      %16 = vector.shape_cast %15 : vector<8x128xf32> to vector<1x8x128xf32>
      %cst_7 = arith.constant dense<0.000000e+00> : vector<1xf32>
      %17 = vector.multi_reduction <add>, %16, %cst_7 [1, 2] : vector<1x8x128xf32> to vector<1xf32>
      %18 = vector.shape_cast %17 : vector<1xf32> to vector<1x1x1xf32>
      %19 = vector.extract %18[0, 0, 0] : f32 from vector<1x1x1xf32>
      scf.yield %14, %19, %12 : i32, f32, vector<8x128xf32>
    }
    %c0_1 = arith.constant 0 : index
    %c0_2 = arith.constant 0 : index
    %8 = vector.load %arg2[%c0_1, %c0_2] : memref<8x128xf32, #tpu.memory_space<vmem>>, vector<8x128xf32>
    tpu.vector_store %arg2[%c0_1, %c0_2], %7#2 {strides = array<i32>} : memref<8x128xf32, #tpu.memory_space<vmem>>, vector<8x128xf32>,
    return
  }
}

</mosaic_0001>

<llo_original>
// kernel: tpu_custom_call.1
$region0: #{tpu_custom_call.1}
  #allocation0 [shape = 'u32[]', space=smem, size = 0x4, offset = 0x4, fixed_abs, tag = 'smem constant byte address 0x4 - core index']
  #allocation1 [shape = 'u32[144,128]{1,0:T(1,128)}', space=vmem, size = 0x12000, scoped, tag = 'internal scratch']
  %s0 = inlined_call_operand.hbm [shape: f32[8,128], index: 0, kind: input, shape index: {}]
  %s1 = inlined_call_operand.hbm [shape: f32[128,128], index: 1, kind: input, shape index: {}]
  %s2 = inlined_call_operand.hbm [shape: f32[8,128], index: 2, kind: output, shape index: {}]
  %s3 = sld [smem:[#allocation0]]
  $region33: #{tpu_custom_call.1} parent=0
    _
  %s5 = ssub.s32 1, %s3
  %s6 = scalar_select 0, %s5, %s3
  $region1: #{tpu_custom_call.1} parent=0
    #allocation2 [shape = 'u8[4096]{0}', space=vmem, size = 0x1000, scoped, tag = 'input window, operand 0, single buffered']
    #allocation3 [shape = 's32[1]{0}', space=sflag, size = 0x4, scoped, tag = 'scoped memory for tpu_custom_call.1']
    #allocation4 [shape = 's32[1]{0}', space=sflag, size = 0x4, scoped, tag = 'scoped memory for tpu_custom_call.1']
    #allocation5 [shape = 'u8[65536]{0}', space=vmem, size = 0x10000, scoped, tag = 'input window, operand 1, single buffered']
    #allocation6 [shape = 's32[1]{0}', space=sflag, size = 0x4, scoped, tag = 'scoped memory for tpu_custom_call.1']
    #allocation7 [shape = 'u8[4096]{0}', space=vmem, size = 0x1000, scoped, tag = 'output window, operand 0, single buffered']
    %7 = vsyncpa [#allocation3], 0
    %8 = vsyncpa [#allocation6], 0
    %9 = vsyncpa [#allocation4], 0
    // Predicated region
    $region2: #{tpu_custom_call.1} parent=1 // pred_check
      _
    $region3: #{tpu_custom_call.1} parent=1 // pred_check_branch
      %11 = sbr.rel (0) target = $region5
    $region4: #{tpu_custom_call.1} parent=1 // pred_region
      %s13 = ssub.s32 128, 128
      %14 = vsyncadd [#allocation3], %s13
      %s16 = sshll.u32 [#allocation2], 4
      %s17 = int_to_ptr.vmem [resolvable:$true] %s16
      %19 = dma.hbm_to_vmem [thread:$0]  %s0, 128, %s17, [#allocation3]
    $region5: #{tpu_custom_call.1} parent=1 // pred_fallthru
      _
    // Predicated region
    $region6: #{tpu_custom_call.1} parent=1 // pred_check
      _
    $region7: #{tpu_custom_call.1} parent=1 // pred_check_branch
      %21 = sbr.rel (0) target = $region9
    $region8: #{tpu_custom_call.1} parent=1 // pred_region
      %s23 = ssub.s32 2048, 2048
      %24 = vsyncadd [#allocation6], %s23
      %s25 = sshll.u32 [#allocation5], 4
      %s26 = int_to_ptr.vmem [resolvable:$true] %s25
      %31 = dma.hbm_to_vmem [thread:$0]  %s1, 2048, %s26, [#allocation6], 128, 128, 8
    $region9: #{tpu_custom_call.1} parent=1 // pred_fallthru
      _
    // Predicated region
    $region10: #{tpu_custom_call.1} parent=1 // pred_check
      _
    $region11: #{tpu_custom_call.1} parent=1 // pred_check_branch
      %33 = sbr.rel (0) target = $region13
    $region12: #{tpu_custom_call.1} parent=1 // pred_region
      %34 = dma.done [#allocation3], 128
    $region13: #{tpu_custom_call.1} parent=1 // pred_fallthru
      _
    // Predicated region
    $region14: #{tpu_custom_call.1} parent=1 // pred_check
      _
    $region15: #{tpu_custom_call.1} parent=1 // pred_check_branch
      %36 = sbr.rel (0) target = $region17
    $region16: #{tpu_custom_call.1} parent=1 // pred_region
      %37 = dma.done [#allocation6], 2048
    $region17: #{tpu_custom_call.1} parent=1 // pred_fallthru
      _
    %v38 = vld [vmem:[#allocation2] sm:$0xff]
    %v39 = vtanh.pop %v38
    %v40 = vmul.f32 %v39, %v39
    %41 = vadd.xlane.f32.xlu0 %v40
    %v42 = vpop.xlane.xlu0 %41
    %v43 = vrot.slane %v42, 4
    %v44 = vadd.f32 %v42, %v43
    %v45 = vrot.slane %v44, 2
    %v46 = vadd.f32 %v44, %v45
    %v47 = vrot.slane %v46, 1
    %v48 = vadd.f32 %v46, %v47
    %s49 = vtos %v48
    // While loop
    $region18: #{tpu_custom_call.1} parent=1 // loop_pre_header
      _
    $region19: #{tpu_custom_call.1} parent=1 // loop_header
      %s51 = sphi 1, %s149
      %s52 = sphi %s49, %s159
      %v53 = vphi %v39, %v147
      %p54 = scmp.lt.s32.totalorder %s51, 50
      %p55 = scmp.lt.f32.partialorder %s52, 1e-08
      %p56 = pneg %p55
      %p57 = pnand %p54, %p56
      %p58 = pneg %p57
    $region20: #{tpu_custom_call.1} parent=1 // loop_header_branch
      %60 = sbr.rel (%p57) target = $region24
    $region21: #{tpu_custom_call.1} parent=1 // loop_body
      %v61 = vld [vmem:[#allocation5] sm:$0xff]
      %v62 = vld [vmem:[#allocation5 + $0x8] sm:$0xff]
      %v63 = vld [vmem:[#allocation5 + $0x10] sm:$0xff]
      %v64 = vld [vmem:[#allocation5 + $0x18] sm:$0xff]
      %v65 = vld [vmem:[#allocation5 + $0x20] sm:$0xff]
      %v66 = vld [vmem:[#allocation5 + $0x28] sm:$0xff]
      %v67 = vld [vmem:[#allocation5 + $0x30] sm:$0xff]
      %v68 = vld [vmem:[#allocation5 + $0x38] sm:$0xff]
      %v69 = vld [vmem:[#allocation5 + $0x40] sm:$0xff]
      %v70 = vld [vmem:[#allocation5 + $0x48] sm:$0xff]
      %v71 = vld [vmem:[#allocation5 + $0x50] sm:$0xff]
      %v72 = vld [vmem:[#allocation5 + $0x58] sm:$0xff]
      %v73 = vld [vmem:[#allocation5 + $0x60] sm:$0xff]
      %v74 = vld [vmem:[#allocation5 + $0x68] sm:$0xff]
      %v75 = vld [vmem:[#allocation5 + $0x70] sm:$0xff]
      %v76 = vld [vmem:[#allocation5 + $0x78] sm:$0xff]
      %77 = vmatprep.subr.mxu0 0.0
      %78 = vmatpush1.msra.mxu0 %v61
      %79 = vmatprep.subr.mxu0 0.0
      %80 = vmatpush1.msra.mxu0 %v62
      %81 = vmatprep.subr.mxu0 0.0
      %82 = vmatpush1.msra.mxu0 %v63
      %83 = vmatprep.subr.mxu0 0.0
      %84 = vmatpush1.msra.mxu0 %v64
      %85 = vmatprep.subr.mxu0 0.0
      %86 = vmatpush1.msra.mxu0 %v65
      %87 = vmatprep.subr.mxu0 0.0
      %88 = vmatpush1.msra.mxu0 %v66
      %89 = vmatprep.subr.mxu0 0.0
      %90 = vmatpush1.msra.mxu0 %v67
      %91 = vmatprep.subr.mxu0 0.0
      %92 = vmatpush1.msra.mxu0 %v68
      %93 = vmatprep.subr.mxu0 0.0
      %94 = vmatpush1.msra.mxu0 %v69
      %95 = vmatprep.subr.mxu0 0.0
      %96 = vmatpush1.msra.mxu0 %v70
      %97 = vmatprep.subr.mxu0 0.0
      %98 = vmatpush1.msra.mxu0 %v71
      %99 = vmatprep.subr.mxu0 0.0
      %100 = vmatpush1.msra.mxu0 %v72
      %101 = vmatprep.subr.mxu0 0.0
      %102 = vmatpush1.msra.mxu0 %v73
      %103 = vmatprep.subr.mxu0 0.0
      %104 = vmatpush1.msra.mxu0 %v74
      %105 = vmatprep.subr.mxu0 0.0
      %106 = vmatpush1.msra.mxu0 %v75
      %107 = vmatprep.subr.mxu0 0.0
      %108 = vmatpush1.msra.mxu0 %v76
      %109 = vmatprep.subr.mxu0 0.0
      %110 = vmatpush1.msra.mxu0 0.0
      %111 = vmatprep.subr.mxu0 0.0
      %112 = vmatpush1.msra.mxu0 0.0
      %113 = vmatprep.subr.mxu0 0.0
      %114 = vmatpush1.msra.mxu0 0.0
      %115 = vmatprep.subr.mxu0 0.0
      %116 = vmatpush1.msra.mxu0 0.0
      %117 = vmatprep.subr.mxu0 0.0
      %118 = vmatpush1.msra.mxu0 0.0
      %119 = vmatprep.subr.mxu0 0.0
      %120 = vmatpush1.msra.mxu0 0.0
      %121 = vmatprep.subr.mxu0 0.0
      %122 = vmatpush1.msra.mxu0 0.0
      %123 = vmatprep.subr.mxu0 0.0
      %124 = vmatpush1.msra.mxu0 0.0
      %125 = vmatprep.subr.mxu0 0.0
      %126 = vmatpush1.msra.mxu0 0.0
      %127 = vmatprep.subr.mxu0 0.0
      %128 = vmatpush1.msra.mxu0 0.0
      %129 = vmatprep.subr.mxu0 0.0
      %130 = vmatpush1.msra.mxu0 0.0
      %131 = vmatprep.subr.mxu0 0.0
      %132 = vmatpush1.msra.mxu0 0.0
      %133 = vmatprep.subr.mxu0 0.0
      %134 = vmatpush1.msra.mxu0 0.0
      %135 = vmatprep.subr.mxu0 0.0
      %136 = vmatpush1.msra.mxu0 0.0
      %137 = vmatprep.subr.mxu0 0.0
      %138 = vmatpush1.msra.mxu0 0.0
      %139 = vmatprep.subr.mxu0 0.0
      %140 = vmatpush1.msra.mxu0 0.0
      %141 = vmatprep.mubr.f32.mxu0 0.0
      %142 = vmatmul.mubr.f32.gmra.mrb[0].mxu0 %v53
      %v143 = vpop.f32.mrb[0].mxu0
      %v144 = vadd.f32 %v38, %v143
      %v145 = vpop.f32.mrb[0].mxu0
      %146 = vdwg.mxu0
      %v147 = vtanh.pop %v144
      %v148 = vsub.f32 %v53, %v147
      %s149 = sadd.s32 %s51, 1
      %v150 = vmul.f32 %v148, %v148
      %151 = vadd.xlane.f32.xlu0 %v150
      %v152 = vpop.xlane.xlu0 %151
      %v153 = vrot.slane %v152, 4
      %v154 = vadd.f32 %v152, %v153
      %v155 = vrot.slane %v154, 2
      %v156 = vadd.f32 %v154, %v155
      %v157 = vrot.slane %v156, 1
      %v158 = vadd.f32 %v156, %v157
      %s159 = vtos %v158
    $region22: #{tpu_custom_call.1} parent=1 // loop_footer
      _
    $region23: #{tpu_custom_call.1} parent=1 // loop_footer_branch
      %50 = sbr.rel target = $region19
    $region24: #{tpu_custom_call.1} parent=1 // loop_exit
      _
    %160 = vst [vmem:[#allocation7] sm:$0xff] %v53
    // Predicated region
    $region25: #{tpu_custom_call.1} parent=1 // pred_check
      _
    $region26: #{tpu_custom_call.1} parent=1 // pred_check_branch
      %162 = sbr.rel (0) target = $region28
    $region27: #{tpu_custom_call.1} parent=1 // pred_region
      %s164 = ssub.s32 128, 128
      %165 = vsyncadd [#allocation4], %s164
      %s167 = sshll.u32 [#allocation7], 4
      %s168 = int_to_ptr.vmem [resolvable:$true] %s167
      %170 = dma.vmem_to_hbm [thread:$0]  %s168, 128, %s2, [#allocation4]
    $region28: #{tpu_custom_call.1} parent=1 // pred_fallthru
      _
    // Predicated region
    $region29: #{tpu_custom_call.1} parent=1 // pred_check
      _
    $region30: #{tpu_custom_call.1} parent=1 // pred_check_branch
      %172 = sbr.rel (0) target = $region32
    $region31: #{tpu_custom_call.1} parent=1 // pred_region
      %173 = dma.done [#allocation4], 128
    $region32: #{tpu_custom_call.1} parent=1 // pred_fallthru
      _
    %174 = vsyncpa [#allocation3], 1
    %175 = vsyncpa [#allocation6], 1
    %176 = vsyncpa [#allocation4], 1

</llo_original>
